<compile_context>
chip_gen: v5e
topology: v5e:2x2
jax: 0.10.0
libtpu: 0.0.40
codegen_flags: <defaults>
</compile_context>

<pallas_src>
import jax
import jax.numpy as jnp
import numpy as np
from jax.experimental import pallas as pl
from jax.experimental.pallas import tpu as pltpu

_LANE = 128      # lane width: last dim padded to a multiple of this
_SUBLANE = 8     # f32 sublane count: batch padded to a multiple of this


def _round_up(x, m):
    return ((x + m - 1) // m) * m


# ---------------------------------------------------------------------------
# Activation semantics (mirrors the PyTorch avtn_lst handling)
# ---------------------------------------------------------------------------
def _apply_activation(act, h):
    if isinstance(act, str):
        if act == 'None':
            return h
        if act == 'expdec':
            return jnp.exp(-h)
        raise ValueError(f"unknown activation string: {act}")
    return act(h)


# ---------------------------------------------------------------------------
# Kernel
# ---------------------------------------------------------------------------
def make_gennn_kernel(avtn_lst, num_layers):
    """Fused L-layer forward: x_ref (B,P), w_ref (L,P,P), b_ref (L,1,P), o_ref (B,P)."""

    def kernel(x_ref, w_ref, b_ref, o_ref):
        h = x_ref[...]
        for k in range(num_layers):
            # h @ W + b on the MXU; padded rows/cols of W are zero so padding
            # never leaks into the valid output columns.
            h = jnp.dot(h, w_ref[k], preferred_element_type=jnp.float32) + b_ref[k]
            h = _apply_activation(avtn_lst[k], h)
            # TODO(synk): nn.Dropout with p_d > 0 (training mode) not implemented;
            #             p_d = 0 is the identity, which is what this kernel assumes.
        o_ref[...] = h.astype(o_ref.dtype)

    return kernel


# ---------------------------------------------------------------------------
# One-time parameter packing (pad + stack -> 2 operands instead of 2*L)
# ---------------------------------------------------------------------------
def pack_gennn_params(weights, biases):
    """weights[k]: (in_k, out_k) == torch Linear weight transposed; biases[k]: (1, out_k)."""
    L = len(weights)
    dims = [weights[0].shape[0]] + [w.shape[1] for w in weights]
    P = _round_up(max(dims), _LANE)
    w_stack = np.zeros((L, P, P), np.float32)
    b_stack = np.zeros((L, 1, P), np.float32)
    for k, (w, b) in enumerate(zip(weights, biases)):
        w = np.asarray(w, np.float32)
        b = np.asarray(b, np.float32).reshape(-1)
        w_stack[k, :w.shape[0], :w.shape[1]] = w
        b_stack[k, 0, :b.shape[0]] = b
    return jnp.asarray(w_stack), jnp.asarray(b_stack), dims


# ---------------------------------------------------------------------------
# Wrapper
# ---------------------------------------------------------------------------
def gennn_forward(alpha, w_stack, b_stack, avtn_lst, out_dim, *, batch_tile=1024):
    """Fused GenNN.forward.

    alpha:    (B, in_dim) float32
    w_stack:  (L, P, P) float32  zero-padded, stacked weights (from pack_gennn_params)
    b_stack:  (L, 1, P) float32  zero-padded, stacked biases
    avtn_lst: list of callables / 'None' / 'expdec', length L
    out_dim:  true output width of the last layer
    """
    L, P, _ = w_stack.shape
    B, in_dim = alpha.shape
    kernel = make_gennn_kernel(avtn_lst, L)
    vmem = pl.BlockSpec(memory_space=pltpu.MemorySpace.VMEM)

    if B <= batch_tile:
        # Small batch: single fused block, no grid, no pipeline machinery.
        Bp = _round_up(B, _SUBLANE)
        x = jnp.zeros((Bp, P), jnp.float32).at[:B, :in_dim].set(
            alpha.astype(jnp.float32))
        out_p = pl.pallas_call(
            kernel,
            out_shape=jax.ShapeDtypeStruct((Bp, P), jnp.float32),
            in_specs=[vmem, vmem, vmem],
            out_specs=vmem,
        )(x, w_stack, b_stack)
    else:
        # Large batch: tile the batch axis, keep weights/biases VMEM-resident
        # (constant index_map), mark the axis "parallel" for megacore / dual-TC.
        Bp = _round_up(B, batch_tile)
        x = jnp.zeros((Bp, P), jnp.float32).at[:B, :in_dim].set(
            alpha.astype(jnp.float32))
        out_p = pl.pallas_call(
            kernel,
            out_shape=jax.ShapeDtypeStruct((Bp, P), jnp.float32),
            grid=(Bp // batch_tile,),
            in_specs=[
                pl.BlockSpec((batch_tile, P), lambda i: (i, 0)),
                pl.BlockSpec((L, P, P), lambda i: (0, 0, 0)),
                pl.BlockSpec((L, 1, P), lambda i: (0, 0, 0)),
            ],
            out_specs=pl.BlockSpec((batch_tile, P), lambda i: (i, 0)),
            compiler_params=pltpu.CompilerParams(
                dimension_semantics=("parallel",)),
        )(x, w_stack, b_stack)

    return out_p[:B, :out_dim]


# ---------------------------------------------------------------------------
# Pure-JAX reference (for correctness check)
# ---------------------------------------------------------------------------
def gennn_ref(alpha, weights, biases, avtn_lst):
    h = alpha.astype(jnp.float32)
    for k in range(len(weights)):
        h = h @ weights[k] + biases[k].reshape(1, -1)
        h = _apply_activation(avtn_lst[k], h)
    return h


# ---------------------------------------------------------------------------
# Main
# ---------------------------------------------------------------------------
if __name__ == "__main__":
    # Module config: GenNN(Layers=[16, 32, 32, 8], p_d=0)
    Layers = [16, 32, 32, 8]
    avtn_lst = [jax.nn.relu, jax.nn.sigmoid, 'expdec']

    key = jax.random.PRNGKey(0)
    k_x, *k_params = jax.random.split(key, 1 + 2 * (len(Layers) - 1))

    weights, biases = [], []
    for i, (l1, l2) in enumerate(zip(Layers, Layers[1:])):
        kw = k_params[2 * i]
        kb = k_params[2 * i + 1]
        weights.append(0.1 * jax.random.normal(kw, (l1, l2), dtype=jnp.float32))
        biases.append(0.1 * jax.random.normal(kb, (1, l2), dtype=jnp.float32))

    w_stack, b_stack, dims = pack_gennn_params(weights, biases)
    out_dim = dims[-1]

    # --- small-batch path (grid-less, single fused block) -------------------
    batch = 4
    alpha = jax.random.normal(k_x, (batch, Layers[0]), dtype=jnp.float32)
    out = jax.block_until_ready(
        gennn_forward(alpha, w_stack, b_stack, avtn_lst, out_dim))
    ref = jax.block_until_ready(gennn_ref(alpha, weights, biases, avtn_lst))
    np.testing.assert_allclose(np.asarray(out), np.asarray(ref),
                               rtol=1e-5, atol=1e-5)

    # --- batch-tiled path (grid over batch, resident weights) ---------------
    batch2 = 2500
    alpha2 = jax.random.normal(k_x, (batch2, Layers[0]), dtype=jnp.float32)
    out2 = jax.block_until_ready(
        gennn_forward(alpha2, w_stack, b_stack, avtn_lst, out_dim,
                      batch_tile=1024))
    ref2 = jax.block_until_ready(gennn_ref(alpha2, weights, biases, avtn_lst))
    np.testing.assert_allclose(np.asarray(out2), np.asarray(ref2),
                               rtol=1e-5, atol=1e-5)

    print("KERNEL_OK")
</pallas_src>

<mosaic_0001>
module attributes {stable_mosaic.version = 11 : i64} {
  func.func @kernel(%arg0: memref<8x128xf32, #tpu.memory_space<vmem>>, %arg1: memref<3x128x128xf32, #tpu.memory_space<vmem>>, %arg2: memref<3x1x128xf32, #tpu.memory_space<vmem>>, %arg3: memref<8x128xf32, #tpu.memory_space<vmem>>) attributes {dimension_semantics = [], scalar_prefetch = 0 : i64, scratch_operands = 0 : i64, tpu.core_type = #tpu.core_type<tc>} {
    %c0 = arith.constant 0 : index
    %c0_0 = arith.constant 0 : index
    %0 = vector.load %arg0[%c0, %c0_0] : memref<8x128xf32, #tpu.memory_space<vmem>>, vector<8x128xf32>
    %c0_1 = arith.constant 0 : index
    %c0_2 = arith.constant 0 : index
    %c0_3 = arith.constant 0 : index
    %1 = vector.load %arg1[%c0_1, %c0_2, %c0_3] : memref<3x128x128xf32, #tpu.memory_space<vmem>>, vector<1x128x128xf32>
    %2 = vector.shape_cast %1 : vector<1x128x128xf32> to vector<128x128xf32>
    %cst = arith.constant dense<0.000000e+00> : vector<8x128xf32>
    %3 = tpu.matmul %0, %2, %cst {dimension_numbers = #tpu.dot_dimension_numbers<[1], [0], [0], [1], [0, 0, 1, 1], [], []>} : vector<8x128xf32>, vector<128x128xf32>, vector<8x128xf32> -> vector<8x128xf32>
    %c0_4 = arith.constant 0 : index
    %c0_5 = arith.constant 0 : index
    %c0_6 = arith.constant 0 : index
    %4 = vector.load %arg2[%c0_4, %c0_5, %c0_6] : memref<3x1x128xf32, #tpu.memory_space<vmem>>, vector<1x1x128xf32>
    %5 = vector.shape_cast %4 : vector<1x1x128xf32> to vector<1x128xf32>
    %6 = vector.broadcast %5 : vector<1x128xf32> to vector<8x128xf32>
    %7 = arith.addf %3, %6 : vector<8x128xf32>
    %cst_7 = arith.constant 0.000000e+00 : f32
    %8 = vector.broadcast %cst_7 : f32 to vector<8x128xf32>
    %9 = arith.maximumf %7, %8 : vector<8x128xf32>
    %c1 = arith.constant 1 : index
    %c0_8 = arith.constant 0 : index
    %c0_9 = arith.constant 0 : index
    %10 = vector.load %arg1[%c1, %c0_8, %c0_9] : memref<3x128x128xf32, #tpu.memory_space<vmem>>, vector<1x128x128xf32>
    %11 = vector.shape_cast %10 : vector<1x128x128xf32> to vector<128x128xf32>
    %cst_10 = arith.constant dense<0.000000e+00> : vector<8x128xf32>
    %12 = tpu.matmul %9, %11, %cst_10 {dimension_numbers = #tpu.dot_dimension_numbers<[1], [0], [0], [1], [0, 0, 1, 1], [], []>} : vector<8x128xf32>, vector<128x128xf32>, vector<8x128xf32> -> vector<8x128xf32>
    %c1_11 = arith.constant 1 : index
    %c0_12 = arith.constant 0 : index
    %c0_13 = arith.constant 0 : index
    %13 = vector.load %arg2[%c1_11, %c0_12, %c0_13] : memref<3x1x128xf32, #tpu.memory_space<vmem>>, vector<1x1x128xf32>
    %14 = vector.shape_cast %13 : vector<1x1x128xf32> to vector<1x128xf32>
    %15 = vector.broadcast %14 : vector<1x128xf32> to vector<8x128xf32>
    %16 = arith.addf %12, %15 : vector<8x128xf32>
    %17 = arith.negf %16 : vector<8x128xf32>
    %18 = math.exp %17 : vector<8x128xf32>
    %cst_14 = arith.constant 1.000000e+00 : f32
    %19 = vector.broadcast %cst_14 : f32 to vector<8x128xf32>
    %20 = arith.addf %19, %18 : vector<8x128xf32>
    %21 = arith.divf %19, %20 : vector<8x128xf32>
    %c2 = arith.constant 2 : index
    %c0_15 = arith.constant 0 : index
    %c0_16 = arith.constant 0 : index
    %22 = vector.load %arg1[%c2, %c0_15, %c0_16] : memref<3x128x128xf32, #tpu.memory_space<vmem>>, vector<1x128x128xf32>
    %23 = vector.shape_cast %22 : vector<1x128x128xf32> to vector<128x128xf32>
    %cst_17 = arith.constant dense<0.000000e+00> : vector<8x128xf32>
    %24 = tpu.matmul %21, %23, %cst_17 {dimension_numbers = #tpu.dot_dimension_numbers<[1], [0], [0], [1], [0, 0, 1, 1], [], []>} : vector<8x128xf32>, vector<128x128xf32>, vector<8x128xf32> -> vector<8x128xf32>
    %c2_18 = arith.constant 2 : index
    %c0_19 = arith.constant 0 : index
    %c0_20 = arith.constant 0 : index
    %25 = vector.load %arg2[%c2_18, %c0_19, %c0_20] : memref<3x1x128xf32, #tpu.memory_space<vmem>>, vector<1x1x128xf32>
    %26 = vector.shape_cast %25 : vector<1x1x128xf32> to vector<1x128xf32>
    %27 = vector.broadcast %26 : vector<1x128xf32> to vector<8x128xf32>
    %28 = arith.addf %24, %27 : vector<8x128xf32>
    %cst_21 = arith.constant 0.000000e+00 : f32
    %29 = vector.broadcast %cst_21 : f32 to vector<8x128xf32>
    %30 = arith.subf %29, %28 : vector<8x128xf32>
    %31 = math.exp %30 : vector<8x128xf32>
    %c0_22 = arith.constant 0 : index
    %c0_23 = arith.constant 0 : index
    %32 = vector.load %arg3[%c0_22, %c0_23] : memref<8x128xf32, #tpu.memory_space<vmem>>, vector<8x128xf32>
    tpu.vector_store %arg3[%c0_22, %c0_23], %31 {strides = array<i32>} : memref<8x128xf32, #tpu.memory_space<vmem>>, vector<8x128xf32>,
    return
  }
}

</mosaic_0001>

<llo_original>
// kernel: tpu_custom_call.1
$region0: #{tpu_custom_call.1}
  #allocation0 [shape = 'u32[]', space=smem, size = 0x4, offset = 0x4, fixed_abs, tag = 'smem constant byte address 0x4 - core index']
  #allocation1 [shape = 'u32[72,128]{1,0:T(1,128)}', space=vmem, size = 0x9000, scoped, tag = 'internal scratch']
  %s0 = inlined_call_operand.hbm [shape: f32[8,128], index: 0, kind: input, shape index: {}]
  %s1 = inlined_call_operand.hbm [shape: f32[3,128,128], index: 1, kind: input, shape index: {}]
  %s2 = inlined_call_operand.hbm [shape: f32[3,1,128], index: 2, kind: input, shape index: {}]
  %s3 = inlined_call_operand.hbm [shape: f32[8,128], index: 3, kind: output, shape index: {}]
  %s4 = sld [smem:[#allocation0]]
  $region34: #{tpu_custom_call.1} parent=0
    _
  %s6 = ssub.s32 1, %s4
  %s7 = scalar_select 0, %s6, %s4
  $region1: #{tpu_custom_call.1} parent=0
    #allocation2 [shape = 'u8[4096]{0}', space=vmem, size = 0x1000, scoped, tag = 'input window, operand 0, single buffered']
    #allocation3 [shape = 's32[1]{0}', space=sflag, size = 0x4, scoped, tag = 'scoped memory for tpu_custom_call.1']
    #allocation4 [shape = 's32[1]{0}', space=sflag, size = 0x4, scoped, tag = 'scoped memory for tpu_custom_call.1']
    #allocation5 [shape = 'u8[196608]{0}', space=vmem, size = 0x30000, scoped, tag = 'input window, operand 1, single buffered']
    #allocation6 [shape = 's32[1]{0}', space=sflag, size = 0x4, scoped, tag = 'scoped memory for tpu_custom_call.1']
    #allocation7 [shape = 'u8[1536]{0}', space=vmem, size = 0x800, scoped, tag = 'input window, operand 2, single buffered']
    #allocation8 [shape = 'u8[4096]{0}', space=vmem, size = 0x1000, scoped, tag = 'output window, operand 0, single buffered']
    %8 = vsyncpa [#allocation3], 0
    %9 = vsyncpa [#allocation6], 0
    %10 = vsyncpa [#allocation4], 0
    // Predicated region
    $region2: #{tpu_custom_call.1} parent=1 // pred_check
      _
    $region3: #{tpu_custom_call.1} parent=1 // pred_check_branch
      %12 = sbr.rel (0) target = $region5
    $region4: #{tpu_custom_call.1} parent=1 // pred_region
      %14 = vsyncadd [#allocation3], 0
      %s16 = sshll.u32 %s0, 4
      %s17 = int_to_ptr.hbm [resolvable:$true] %s16
      %s18 = sshll.u32 [#allocation2], 4
      %s19 = int_to_ptr.vmem [resolvable:$true] %s18
      %21 = dma.hbm_to_vmem [thread:$0]  %s17, 128, %s19, [#allocation3]
    $region5: #{tpu_custom_call.1} parent=1 // pred_fallthru
      _
    // Predicated region
    $region6: #{tpu_custom_call.1} parent=1 // pred_check
      _
    $region7: #{tpu_custom_call.1} parent=1 // pred_check_branch
      %23 = sbr.rel (0) target = $region9
    $region8: #{tpu_custom_call.1} parent=1 // pred_region
      %25 = vsyncadd [#allocation6], 0
      %s26 = sshll.u32 %s1, 4
      %s27 = int_to_ptr.hbm [resolvable:$true] %s26
      %s28 = sshll.u32 [#allocation5], 4
      %s29 = int_to_ptr.vmem [resolvable:$true] %s28
      %34 = dma.hbm_to_vmem [thread:$0]  %s27, 6144, %s29, [#allocation6], 128, 128, 8
    $region9: #{tpu_custom_call.1} parent=1 // pred_fallthru
      _
    // Predicated region
    $region10: #{tpu_custom_call.1} parent=1 // pred_check
      _
    $region11: #{tpu_custom_call.1} parent=1 // pred_check_branch
      %36 = sbr.rel (0) target = $region13
    $region12: #{tpu_custom_call.1} parent=1 // pred_region
      %38 = vsyncadd [#allocation6], 0
      %s39 = sshll.u32 %s2, 4
      %s40 = int_to_ptr.hbm [resolvable:$true] %s39
      %s41 = sshll.u32 [#allocation7], 4
      %s42 = int_to_ptr.vmem [resolvable:$true] %s41
      %47 = dma.hbm_to_vmem [thread:$0]  %s40, 48, %s42, [#allocation6], 16, 16, 1
    $region13: #{tpu_custom_call.1} parent=1 // pred_fallthru
      _
    // Predicated region
    $region14: #{tpu_custom_call.1} parent=1 // pred_check
      _
    $region15: #{tpu_custom_call.1} parent=1 // pred_check_branch
      %49 = sbr.rel (0) target = $region17
    $region16: #{tpu_custom_call.1} parent=1 // pred_region
      %51 = dma.done [#allocation3], 128
    $region17: #{tpu_custom_call.1} parent=1 // pred_fallthru
      _
    // Predicated region
    $region18: #{tpu_custom_call.1} parent=1 // pred_check
      _
    $region19: #{tpu_custom_call.1} parent=1 // pred_check_branch
      %53 = sbr.rel (0) target = $region21
    $region20: #{tpu_custom_call.1} parent=1 // pred_region
      %55 = dma.done [#allocation6], 6144
    $region21: #{tpu_custom_call.1} parent=1 // pred_fallthru
      _
    // Predicated region
    $region22: #{tpu_custom_call.1} parent=1 // pred_check
      _
    $region23: #{tpu_custom_call.1} parent=1 // pred_check_branch
      %57 = sbr.rel (0) target = $region25
    $region24: #{tpu_custom_call.1} parent=1 // pred_region
      %59 = dma.done [#allocation6], 48
    $region25: #{tpu_custom_call.1} parent=1 // pred_fallthru
      _
    %v60 = vld [vmem:[#allocation2] sm:$0xff]
    %v61 = vld [vmem:[#allocation5] sm:$0xff]
    %v62 = vld [vmem:[#allocation5 + $0x8] sm:$0xff]
    %v63 = vld [vmem:[#allocation5 + $0x10] sm:$0xff]
    %v64 = vld [vmem:[#allocation5 + $0x18] sm:$0xff]
    %v65 = vld [vmem:[#allocation5 + $0x20] sm:$0xff]
    %v66 = vld [vmem:[#allocation5 + $0x28] sm:$0xff]
    %v67 = vld [vmem:[#allocation5 + $0x30] sm:$0xff]
    %v68 = vld [vmem:[#allocation5 + $0x38] sm:$0xff]
    %v69 = vld [vmem:[#allocation5 + $0x40] sm:$0xff]
    %v70 = vld [vmem:[#allocation5 + $0x48] sm:$0xff]
    %v71 = vld [vmem:[#allocation5 + $0x50] sm:$0xff]
    %v72 = vld [vmem:[#allocation5 + $0x58] sm:$0xff]
    %v73 = vld [vmem:[#allocation5 + $0x60] sm:$0xff]
    %v74 = vld [vmem:[#allocation5 + $0x68] sm:$0xff]
    %v75 = vld [vmem:[#allocation5 + $0x70] sm:$0xff]
    %v76 = vld [vmem:[#allocation5 + $0x78] sm:$0xff]
    %v77 = vld [vmem:[#allocation7] sm:$0x1]
    %v79 = vperm.slane %v77, 0
    %81 = vmatpush.msra.mxu0 %v76
    %82 = vmatpush.msra.mxu0 %v75
    %83 = vmatpush.msra.mxu0 %v74
    %84 = vmatpush.msra.mxu0 %v73
    %85 = vmatpush.msra.mxu0 %v72
    %86 = vmatpush.msra.mxu0 %v71
    %87 = vmatpush.msra.mxu0 %v70
    %88 = vmatpush.msra.mxu0 %v69
    %89 = vmatpush.msra.mxu0 %v68
    %90 = vmatpush.msra.mxu0 %v67
    %91 = vmatpush.msra.mxu0 %v66
    %92 = vmatpush.msra.mxu0 %v65
    %93 = vmatpush.msra.mxu0 %v64
    %94 = vmatpush.msra.mxu0 %v63
    %95 = vmatpush.msra.mxu0 %v62
    %96 = vmatpush.msra.mxu0 %v61
    %97 = vmatmul.f32.gmra.mxu0 %v60
    %v98 = vpop.f32.mrf.mxu0
    %v99 = vadd.f32 %v79, %v98
    %100 = vdwg.mxu0
    %v101 = vmax.f32 %v99, 0.0
    %s102 = scalar_lea.vmem [#allocation5], 128
    %v103 = vld [vmem:[%s102] sm:$0xff]
    %v104 = vld [vmem:[%s102 + $0x8] sm:$0xff]
    %v105 = vld [vmem:[%s102 + $0x10] sm:$0xff]
    %v106 = vld [vmem:[%s102 + $0x18] sm:$0xff]
    %v107 = vld [vmem:[%s102 + $0x20] sm:$0xff]
    %v108 = vld [vmem:[%s102 + $0x28] sm:$0xff]
    %v109 = vld [vmem:[%s102 + $0x30] sm:$0xff]
    %v110 = vld [vmem:[%s102 + $0x38] sm:$0xff]
    %v111 = vld [vmem:[%s102 + $0x40] sm:$0xff]
    %v112 = vld [vmem:[%s102 + $0x48] sm:$0xff]
    %v113 = vld [vmem:[%s102 + $0x50] sm:$0xff]
    %v114 = vld [vmem:[%s102 + $0x58] sm:$0xff]
    %v115 = vld [vmem:[%s102 + $0x60] sm:$0xff]
    %v116 = vld [vmem:[%s102 + $0x68] sm:$0xff]
    %v117 = vld [vmem:[%s102 + $0x70] sm:$0xff]
    %v118 = vld [vmem:[%s102 + $0x78] sm:$0xff]
    %s119 = scalar_lea.vmem [#allocation7], 1
    %v120 = vld [vmem:[%s119] sm:$0x1]
    %v122 = vperm.slane %v120, 0
    %124 = vmatpush.msra.mxu0 %v118
    %125 = vmatpush.msra.mxu0 %v117
    %126 = vmatpush.msra.mxu0 %v116
    %127 = vmatpush.msra.mxu0 %v115
    %128 = vmatpush.msra.mxu0 %v114
    %129 = vmatpush.msra.mxu0 %v113
    %130 = vmatpush.msra.mxu0 %v112
    %131 = vmatpush.msra.mxu0 %v111
    %132 = vmatpush.msra.mxu0 %v110
    %133 = vmatpush.msra.mxu0 %v109
    %134 = vmatpush.msra.mxu0 %v108
    %135 = vmatpush.msra.mxu0 %v107
    %136 = vmatpush.msra.mxu0 %v106
    %137 = vmatpush.msra.mxu0 %v105
    %138 = vmatpush.msra.mxu0 %v104
    %139 = vmatpush.msra.mxu0 %v103
    %140 = vmatmul.f32.gmra.mxu0 %v101
    %v141 = vpop.f32.mrf.mxu0
    %v142 = vadd.f32 %v122, %v141
    %143 = vdwg.mxu0
    %v144 = vxor.u32 %v142, 2147483648
    %v145 = vmul.f32 %v144, 1.442695
    %v146 = vpow.pop %v145
    %v147 = vadd.f32 %v146, 1.0
    %v148 = vrcp.pop %v147
    %v149 = vmul.f32 %v147, %v148
    %v150 = vsub.f32 1.0, %v149
    %v151 = vmul.f32 %v148, %v150
    %v152 = vadd.f32 %v148, %v151
    %vm153 = vweird.f32 %v147
    %vm154 = vweird.f32 %v148
    %vm155 = vmor %vm153, %vm154
    %v156 = vsel %vm155, %v148, %v152
    %v157 = vand.u32 2147483647, %v147
    %vm158 = vcmp.eq.f32.partialorder %v157, 8.507059e+37
    %v159 = vand.u32 %v147, 2147483648
    %v160 = vor.u32 1.1754944e-38, %v159
    %v161 = vsel %vm158, %v160, %v156
    %v162 = vmul.f32 1.0, %v161
    %s163 = scalar_lea.vmem [#allocation5], 256
    %v164 = vld [vmem:[%s163] sm:$0xff]
    %v165 = vld [vmem:[%s163 + $0x8] sm:$0xff]
    %v166 = vld [vmem:[%s163 + $0x10] sm:$0xff]
    %v167 = vld [vmem:[%s163 + $0x18] sm:$0xff]
    %v168 = vld [vmem:[%s163 + $0x20] sm:$0xff]
    %v169 = vld [vmem:[%s163 + $0x28] sm:$0xff]
    %v170 = vld [vmem:[%s163 + $0x30] sm:$0xff]
    %v171 = vld [vmem:[%s163 + $0x38] sm:$0xff]
    %v172 = vld [vmem:[%s163 + $0x40] sm:$0xff]
    %v173 = vld [vmem:[%s163 + $0x48] sm:$0xff]
    %v174 = vld [vmem:[%s163 + $0x50] sm:$0xff]
    %v175 = vld [vmem:[%s163 + $0x58] sm:$0xff]
    %v176 = vld [vmem:[%s163 + $0x60] sm:$0xff]
    %v177 = vld [vmem:[%s163 + $0x68] sm:$0xff]
    %v178 = vld [vmem:[%s163 + $0x70] sm:$0xff]
    %v179 = vld [vmem:[%s163 + $0x78] sm:$0xff]
    %s180 = scalar_lea.vmem [#allocation7], 2
    %v181 = vld [vmem:[%s180] sm:$0x1]
    %v183 = vperm.slane %v181, 0
    %185 = vmatpush.msra.mxu0 %v179
    %186 = vmatpush.msra.mxu0 %v178
    %187 = vmatpush.msra.mxu0 %v177
    %188 = vmatpush.msra.mxu0 %v176
    %189 = vmatpush.msra.mxu0 %v175
    %190 = vmatpush.msra.mxu0 %v174
    %191 = vmatpush.msra.mxu0 %v173
    %192 = vmatpush.msra.mxu0 %v172
    %193 = vmatpush.msra.mxu0 %v171
    %194 = vmatpush.msra.mxu0 %v170
    %195 = vmatpush.msra.mxu0 %v169
    %196 = vmatpush.msra.mxu0 %v168
    %197 = vmatpush.msra.mxu0 %v167
    %198 = vmatpush.msra.mxu0 %v166
    %199 = vmatpush.msra.mxu0 %v165
    %200 = vmatpush.msra.mxu0 %v164
    %201 = vmatmul.f32.gmra.mxu0 %v162
    %v202 = vpop.f32.mrf.mxu0
    %v203 = vadd.f32 %v183, %v202
    %204 = vdwg.mxu0
    %v205 = vsub.f32 0.0, %v203
    %v206 = vmul.f32 %v205, 1.442695
    %v207 = vpow.pop %v206
    %208 = vst [vmem:[#allocation8] sm:$0xff] %v207
    // Predicated region
    $region26: #{tpu_custom_call.1} parent=1 // pred_check
      _
    $region27: #{tpu_custom_call.1} parent=1 // pred_check_branch
      %210 = sbr.rel (0) target = $region29
    $region28: #{tpu_custom_call.1} parent=1 // pred_region
      %212 = vsyncadd [#allocation4], 0
      %s214 = sshll.u32 [#allocation8], 4
      %s215 = int_to_ptr.vmem [resolvable:$true] %s214
      %s216 = sshll.u32 %s3, 4
      %s217 = int_to_ptr.hbm [resolvable:$true] %s216
      %219 = dma.vmem_to_hbm [thread:$0]  %s215, 128, %s217, [#allocation4]
    $region29: #{tpu_custom_call.1} parent=1 // pred_fallthru
      _
    // Predicated region
    $region30: #{tpu_custom_call.1} parent=1 // pred_check
      _
    $region31: #{tpu_custom_call.1} parent=1 // pred_check_branch
      %221 = sbr.rel (0) target = $region33
    $region32: #{tpu_custom_call.1} parent=1 // pred_region
      %223 = dma.done [#allocation4], 128
    $region33: #{tpu_custom_call.1} parent=1 // pred_fallthru
      _
    %224 = vsyncpa [#allocation3], 1
    %225 = vsyncpa [#allocation6], 1
    %226 = vsyncpa [#allocation4], 1

</llo_original>
